<compile_context>
chip_gen: v7x
topology: tpu7x:2x2x1
jax: 0.10.0
libtpu: 0.0.40
codegen_flags: <defaults>
</compile_context>

<pallas_src>
import functools

import jax
import jax.numpy as jnp
from jax import lax
from jax.experimental import pallas as pl
from jax.experimental.pallas import tpu as pltpu

LANE = 128          # TPU lane width; output layer is padded to a multiple of this.
NEG_BIG = -1e30     # logit value for padded output lanes (exp() -> 0, never the max).


def _round_up(x, m):
    return ((x + m - 1) // m) * m


def policy_kernel(x_ref, w1_ref, b1_ref, w2_ref, b2_ref, out_ref):
    """One batch tile: x [bt, n_states] -> probs [bt, lanes] (lane-dense, padded)."""
    # --- Hidden layer: linear + ReLU ------------------------------------------------
    # w1 is PyTorch-layout [n_hidden, n_states]; contract dim 1 of both operands
    # (NT matmul) so no transpose is materialized anywhere.
    x = x_ref[...].astype(w1_ref.dtype)
    h = lax.dot_general(x, w1_ref[...], (((1,), (1,)), ((), ())),
                        preferred_element_type=jnp.float32)       # [bt, n_hidden] f32
    h = jnp.maximum(h + b1_ref[...], 0.0)                         # bias + ReLU in f32

    # --- Output layer: linear + softmax over dim 1 ----------------------------------
    # w2 is padded to [lanes, n_hidden]; pad rows are zero, pad bias lanes are -1e30,
    # so padded lanes never win the max and contribute exactly 0 to the sum.
    logits = lax.dot_general(h.astype(w2_ref.dtype), w2_ref[...],
                             (((1,), (1,)), ((), ())),
                             preferred_element_type=jnp.float32)  # [bt, lanes] f32
    logits = logits + b2_ref[...]
    m = jnp.max(logits, axis=1, keepdims=True)
    e = jnp.exp(logits - m)
    denom = jnp.sum(e, axis=1, keepdims=True)
    # Divide on the EUP (approx reciprocal) instead of the VALU.
    out_ref[...] = e * pl.reciprocal(denom, approx=True)


def prepare_policy_params(w1, b1, w2, b2, *, param_dtype=jnp.float32):
    """One-time conversion of PyTorch nn.Linear params to kernel layout.

    Keeps the [out, in] layout (kernel contracts NT, no transpose), pads layer 2 to a
    lane-dense 128-wide slab, keeps biases in f32 (elementwise path is f32 everywhere).
    Pass param_dtype=jnp.bfloat16 on v6e/v7x to run the MXU in bf16.
    """
    n_hidden, n_states = w1.shape
    n_output = w2.shape[0]
    lanes = _round_up(n_output, LANE)

    w1_k = w1.astype(param_dtype)                                    # [n_hidden, n_states]
    b1_k = b1.astype(jnp.float32).reshape(1, n_hidden)               # [1, n_hidden]
    w2_k = jnp.zeros((lanes, n_hidden), param_dtype).at[:n_output].set(
        w2.astype(param_dtype))                                      # [lanes, n_hidden]
    b2_k = jnp.full((1, lanes), NEG_BIG, jnp.float32).at[0, :n_output].set(
        b2.astype(jnp.float32))                                      # [1, lanes]
    return (w1_k, b1_k, w2_k, b2_k, n_output)


def policy_forward(x, params, *, block_b=None):
    """x: [B, n_states] float32; params from prepare_policy_params. Returns [B, n_output]."""
    w1, b1, w2p, b2p, n_output = params
    B, n_states = x.shape
    n_hidden = w1.shape[0]
    lanes = w2p.shape[0]

    # Batch tile: multiple of 8 sublanes; big enough to amortize per-step overhead,
    # small enough (block_b x 128 f32 out tile, double-buffered) for v7x's 64 MiB VMEM.
    if block_b is None:
        block_b = 256 if B >= 256 else _round_up(B, 8)
    Bp = _round_up(B, block_b)
    xp = jnp.pad(x, ((0, Bp - B), (0, 0))) if Bp != B else x

    out_padded = pl.pallas_call(
        policy_kernel,
        out_shape=jax.ShapeDtypeStruct((Bp, lanes), jnp.float32),
        grid=(Bp // block_b,),
        in_specs=[
            pl.BlockSpec((block_b, n_states), lambda i: (i, 0)),   # x: tiled over batch
            pl.BlockSpec((n_hidden, n_states), lambda i: (0, 0)),  # w1: VMEM-resident
            pl.BlockSpec((1, n_hidden), lambda i: (0, 0)),         # b1: VMEM-resident
            pl.BlockSpec((lanes, n_hidden), lambda i: (0, 0)),     # w2 (padded)
            pl.BlockSpec((1, lanes), lambda i: (0, 0)),            # b2 (padded)
        ],
        out_specs=pl.BlockSpec((block_b, lanes), lambda i: (i, 0)),
        compiler_params=pltpu.CompilerParams(
            dimension_semantics=("parallel",)),                    # v7x: 2 TCs over batch
    )(xp, w1, b1, w2p, b2p)

    # Padded-output pattern: kernel writes lane-dense; slice back to the logical shape.
    return out_padded[:B, :n_output]


def init_linear_params(key, in_features, out_features):
    """Deterministic init mimicking nn.Linear default: U(-1/sqrt(in), 1/sqrt(in))."""
    kw, kb = jax.random.split(key)
    bound = 1.0 / jnp.sqrt(jnp.float32(in_features))
    w = jax.random.uniform(kw, (out_features, in_features),
                           minval=-bound, maxval=bound, dtype=jnp.float32)
    b = jax.random.uniform(kb, (out_features,),
                           minval=-bound, maxval=bound, dtype=jnp.float32)
    return w, b


if __name__ == "__main__":
    # CartPole-v0: n_states = 4, n_output (actions) = 2; n_hidden = 32.
    n_states, n_hidden, n_output = 4, 32, 2

    key = jax.random.PRNGKey(0)
    k_x, k_l1, k_l2, k_xb = jax.random.split(key, 4)

    w1, b1 = init_linear_params(k_l1, n_states, n_hidden)
    w2, b2 = init_linear_params(k_l2, n_hidden, n_output)
    params = prepare_policy_params(w1, b1, w2, b2)   # one-time layout/padding work

    def ref_forward(x):  # pure-JAX reference, same math as the PyTorch forward
        h = jnp.maximum(x @ w1.T + b1, 0.0)
        return jax.nn.softmax(h @ w2.T + b2, axis=1)

    # --- Small batch (matches the RL rollout use-case) -------------------------------
    x_small = jax.random.normal(k_x, (2, n_states), dtype=jnp.float32)
    out_small = jax.block_until_ready(policy_forward(x_small, params))
    ref_small = ref_forward(x_small)
    assert out_small.shape == (2, n_output)
    # approx reciprocal (EUP) has ~1e-3-level relative error -> loosened tolerance.
    assert jnp.allclose(out_small, ref_small, atol=5e-3, rtol=5e-3)
    assert jnp.allclose(jnp.sum(out_small, axis=1), 1.0, atol=5e-3)

    # --- Larger batch: exercises the batch grid (3 tiles) and batch padding ----------
    x_big = jax.random.normal(k_xb, (300, n_states), dtype=jnp.float32)
    out_big = jax.block_until_ready(policy_forward(x_big, params, block_b=128))
    ref_big = ref_forward(x_big)
    assert out_big.shape == (300, n_output)
    assert jnp.allclose(out_big, ref_big, atol=5e-3, rtol=5e-3)

    print("KERNEL_OK")
</pallas_src>

<mosaic_0001>
module attributes {stable_mosaic.version = 11 : i64} {
  func.func @policy_kernel(%arg0: i32, %arg1: memref<8x4xf32, #tpu.memory_space<vmem>>, %arg2: memref<32x4xf32, #tpu.memory_space<vmem>>, %arg3: memref<1x32xf32, #tpu.memory_space<vmem>>, %arg4: memref<128x32xf32, #tpu.memory_space<vmem>>, %arg5: memref<1x128xf32, #tpu.memory_space<vmem>>, %arg6: memref<8x128xf32, #tpu.memory_space<vmem>>) attributes {dimension_semantics = [#tpu.dimension_semantics<parallel>], iteration_bounds = array<i64: 1>, scalar_prefetch = 0 : i64, scratch_operands = 0 : i64, tpu.core_type = #tpu.core_type<tc>, window_params = [{transform_indices = @transform_0, window_bounds = array<i64: 8, 4>}, {pipeline_mode = #tpu.pipeline_mode<synchronous>, transform_indices = @transform_1, window_bounds = array<i64: 32, 4>}, {pipeline_mode = #tpu.pipeline_mode<synchronous>, transform_indices = @transform_2, window_bounds = array<i64: 1, 32>}, {pipeline_mode = #tpu.pipeline_mode<synchronous>, transform_indices = @transform_3, window_bounds = array<i64: 128, 32>}, {pipeline_mode = #tpu.pipeline_mode<synchronous>, transform_indices = @transform_4, window_bounds = array<i64: 1, 128>}, {transform_indices = @transform_5, window_bounds = array<i64: 8, 128>}]} {
    %c0 = arith.constant 0 : index
    %c0_0 = arith.constant 0 : index
    %0 = vector.load %arg1[%c0, %c0_0] : memref<8x4xf32, #tpu.memory_space<vmem>>, vector<8x4xf32>
    %c0_1 = arith.constant 0 : index
    %c0_2 = arith.constant 0 : index
    %1 = vector.load %arg2[%c0_1, %c0_2] : memref<32x4xf32, #tpu.memory_space<vmem>>, vector<32x4xf32>
    %cst = arith.constant dense<0.000000e+00> : vector<8x32xf32>
    %2 = tpu.matmul %0, %1, %cst {dimension_numbers = #tpu.dot_dimension_numbers<[1], [1], [0], [0], [0, 0, 1, 0], [], []>} : vector<8x4xf32>, vector<32x4xf32>, vector<8x32xf32> -> vector<8x32xf32>
    %c0_3 = arith.constant 0 : index
    %c0_4 = arith.constant 0 : index
    %3 = vector.load %arg3[%c0_3, %c0_4] : memref<1x32xf32, #tpu.memory_space<vmem>>, vector<1x32xf32>
    %4 = vector.broadcast %3 : vector<1x32xf32> to vector<8x32xf32>
    %5 = arith.addf %2, %4 : vector<8x32xf32>
    %cst_5 = arith.constant 0.000000e+00 : f32
    %6 = vector.broadcast %cst_5 : f32 to vector<8x32xf32>
    %7 = arith.maximumf %5, %6 : vector<8x32xf32>
    %c0_6 = arith.constant 0 : index
    %c0_7 = arith.constant 0 : index
    %8 = vector.load %arg4[%c0_6, %c0_7] : memref<128x32xf32, #tpu.memory_space<vmem>>, vector<128x32xf32>
    %cst_8 = arith.constant dense<0.000000e+00> : vector<8x128xf32>
    %9 = tpu.matmul %7, %8, %cst_8 {dimension_numbers = #tpu.dot_dimension_numbers<[1], [1], [0], [0], [0, 0, 1, 0], [], []>} : vector<8x32xf32>, vector<128x32xf32>, vector<8x128xf32> -> vector<8x128xf32>
    %c0_9 = arith.constant 0 : index
    %c0_10 = arith.constant 0 : index
    %10 = vector.load %arg5[%c0_9, %c0_10] : memref<1x128xf32, #tpu.memory_space<vmem>>, vector<1x128xf32>
    %11 = vector.broadcast %10 : vector<1x128xf32> to vector<8x128xf32>
    %12 = arith.addf %9, %11 : vector<8x128xf32>
    %cst_11 = arith.constant dense<0xFF800000> : vector<8xf32>
    %13 = vector.multi_reduction <maximumf>, %12, %cst_11 [1] : vector<8x128xf32> to vector<8xf32>
    %14 = vector.shape_cast %13 : vector<8xf32> to vector<8x1xf32>
    %15 = vector.broadcast %14 : vector<8x1xf32> to vector<8x128xf32>
    %16 = arith.subf %12, %15 : vector<8x128xf32>
    %17 = math.exp %16 : vector<8x128xf32>
    %cst_12 = arith.constant dense<0.000000e+00> : vector<8xf32>
    %18 = vector.multi_reduction <add>, %17, %cst_12 [1] : vector<8x128xf32> to vector<8xf32>
    %19 = vector.shape_cast %18 : vector<8xf32> to vector<8x1xf32>
    %20 = tpu.reciprocal %19 {approx = true} : vector<8x1xf32> -> vector<8x1xf32>
    %21 = vector.broadcast %20 : vector<8x1xf32> to vector<8x128xf32>
    %22 = arith.mulf %17, %21 : vector<8x128xf32>
    %c0_13 = arith.constant 0 : index
    %c0_14 = arith.constant 0 : index
    %23 = vector.load %arg6[%c0_13, %c0_14] : memref<8x128xf32, #tpu.memory_space<vmem>>, vector<8x128xf32>
    tpu.vector_store %arg6[%c0_13, %c0_14], %22 {strides = array<i32>} : memref<8x128xf32, #tpu.memory_space<vmem>>, vector<8x128xf32>,
    return
  }
  func.func @transform_0(%arg0: i32) -> (i32, i32) {
    %c0_i32 = arith.constant 0 : i32
    %c0_i32_0 = arith.constant 0 : i32
    return %arg0, %c0_i32 : i32, i32
  }
  func.func @transform_1(%arg0: i32) -> (i32, i32) {
    %c0_i32 = arith.constant 0 : i32
    %c0_i32_0 = arith.constant 0 : i32
    %c0_i32_1 = arith.constant 0 : i32
    return %c0_i32, %c0_i32_0 : i32, i32
  }
  func.func @transform_2(%arg0: i32) -> (i32, i32) {
    %c0_i32 = arith.constant 0 : i32
    %c0_i32_0 = arith.constant 0 : i32
    %c0_i32_1 = arith.constant 0 : i32
    return %c0_i32, %c0_i32_0 : i32, i32
  }
  func.func @transform_3(%arg0: i32) -> (i32, i32) {
    %c0_i32 = arith.constant 0 : i32
    %c0_i32_0 = arith.constant 0 : i32
    %c0_i32_1 = arith.constant 0 : i32
    return %c0_i32, %c0_i32_0 : i32, i32
  }
  func.func @transform_4(%arg0: i32) -> (i32, i32) {
    %c0_i32 = arith.constant 0 : i32
    %c0_i32_0 = arith.constant 0 : i32
    %c0_i32_1 = arith.constant 0 : i32
    return %c0_i32, %c0_i32_0 : i32, i32
  }
  func.func @transform_5(%arg0: i32) -> (i32, i32) {
    %c0_i32 = arith.constant 0 : i32
    %c0_i32_0 = arith.constant 0 : i32
    return %arg0, %c0_i32 : i32, i32
  }
}

</mosaic_0001>

<llo_original>
// kernel: tpu_custom_call.1
$region0: #{tpu_custom_call.1}
  #allocation0 [shape = 'u32[]', space=smem, size = 0x4, offset = 0x4, fixed_abs, tag = 'smem constant byte address 0x4 - core index']
  #allocation1 [shape = 'u32[144,128]{1,0:T(1,128)}', space=vmem, size = 0x12000, scoped, tag = 'internal scratch']
  %s0 = inlined_call_operand.vmem [shape: f32[8,4], index: 0, kind: input, shape index: {}]
  %s1 = inlined_call_operand.vmem [shape: f32[32,4], index: 1, kind: input, shape index: {}]
  %s2 = inlined_call_operand.vmem [shape: f32[1,32], index: 2, kind: input, shape index: {}]
  %s3 = inlined_call_operand.vmem [shape: f32[128,32], index: 3, kind: input, shape index: {}]
  %s4 = inlined_call_operand.vmem [shape: f32[1,128], index: 4, kind: input, shape index: {}]
  %s5 = inlined_call_operand.hbm [shape: f32[8,128], index: 5, kind: output, shape index: {}]
  %s6 = sld [smem:[#allocation0]]
  $region30: #{tpu_custom_call.1} parent=0
    _
  %s8 = ssub.s32 1, %s6
  %s9 = scalar_select 0, %s8, %s6
  $region1: #{tpu_custom_call.1} parent=0
    #allocation2 [shape = 'u8[4096]{0}', space=vmem, size = 0x1000, scoped, tag = 'output window, operand 0, single buffered']
    #allocation3 [shape = 's32[1]{0}', space=sflag, size = 0x4, scoped, tag = 'scoped memory for tpu_custom_call.1']
    %10 = vsyncpa [#allocation3], 0
    // Predicated region
    $region2: #{tpu_custom_call.1} parent=1 // pred_check
      _
    $region3: #{tpu_custom_call.1} parent=1 // pred_check_branch
      %12 = sbr.rel (0) target = $region5
    $region4: #{tpu_custom_call.1} parent=1 // pred_region
      _
    $region5: #{tpu_custom_call.1} parent=1 // pred_fallthru
      _
    // Predicated region
    $region6: #{tpu_custom_call.1} parent=1 // pred_check
      _
    $region7: #{tpu_custom_call.1} parent=1 // pred_check_branch
      %14 = sbr.rel (0) target = $region9
    $region8: #{tpu_custom_call.1} parent=1 // pred_region
      _
    $region9: #{tpu_custom_call.1} parent=1 // pred_fallthru
      _
    // Predicated region
    $region10: #{tpu_custom_call.1} parent=1 // pred_check
      _
    $region11: #{tpu_custom_call.1} parent=1 // pred_check_branch
      %16 = sbr.rel (0) target = $region13
    $region12: #{tpu_custom_call.1} parent=1 // pred_region
      _
    $region13: #{tpu_custom_call.1} parent=1 // pred_fallthru
      _
    // Predicated region
    $region14: #{tpu_custom_call.1} parent=1 // pred_check
      _
    $region15: #{tpu_custom_call.1} parent=1 // pred_check_branch
      %18 = sbr.rel (0) target = $region17
    $region16: #{tpu_custom_call.1} parent=1 // pred_region
      _
    $region17: #{tpu_custom_call.1} parent=1 // pred_fallthru
      _
    // Predicated region
    $region18: #{tpu_custom_call.1} parent=1 // pred_check
      _
    $region19: #{tpu_custom_call.1} parent=1 // pred_check_branch
      %20 = sbr.rel (0) target = $region21
    $region20: #{tpu_custom_call.1} parent=1 // pred_region
      _
    $region21: #{tpu_custom_call.1} parent=1 // pred_fallthru
      _
    %v21 = vld [vmem:[%s0] sm:$0xff]
    %v22 = vld [vmem:[%s1] sm:$0xff]
    %v23 = vld [vmem:[%s1 + $0x8] sm:$0xff]
    %v24 = vld [vmem:[%s1 + $0x10] sm:$0xff]
    %v25 = vld [vmem:[%s1 + $0x18] sm:$0xff]
    %v26 = vld [vmem:[%s2] sm:$0x1]
    %v28 = vlaneseq
    %v29 = vshrl.u32 %v28, 7
    %v30 = vsub.s32 0, %v29
    %v31 = vrot.slane %v26, %v30
    %vm33 = vcmask 31744
    %v35 = vsel %vm33, %v21, 0
    %v38 = vsel %vm33, %v22, 0
    %v41 = vsel %vm33, %v23, 0
    %v44 = vsel %vm33, %v24, 0
    %v47 = vsel %vm33, %v25, 0
    %49 = vmatprep.subr.mxu0 0.0
    %50 = vmatpush1.xpose.msra.mxu0 %v38
    %51 = vmatprep.subr.mxu0 0.0
    %52 = vmatpush1.xpose.msra.mxu0 %v41
    %53 = vmatprep.subr.mxu0 0.0
    %54 = vmatpush1.xpose.msra.mxu0 %v44
    %55 = vmatprep.subr.mxu0 0.0
    %56 = vmatpush1.xpose.msra.mxu0 %v47
    %57 = vmatprep.subr.mxu0 0.0
    %58 = vmatpush1.xpose.msra.mxu0 0.0
    %59 = vmatprep.subr.mxu0 0.0
    %60 = vmatpush1.xpose.msra.mxu0 0.0
    %61 = vmatprep.subr.mxu0 0.0
    %62 = vmatpush1.xpose.msra.mxu0 0.0
    %63 = vmatprep.subr.mxu0 0.0
    %64 = vmatpush1.xpose.msra.mxu0 0.0
    %65 = vmatprep.subr.mxu0 0.0
    %66 = vmatpush1.xpose.msra.mxu0 0.0
    %67 = vmatprep.subr.mxu0 0.0
    %68 = vmatpush1.xpose.msra.mxu0 0.0
    %69 = vmatprep.subr.mxu0 0.0
    %70 = vmatpush1.xpose.msra.mxu0 0.0
    %71 = vmatprep.subr.mxu0 0.0
    %72 = vmatpush1.xpose.msra.mxu0 0.0
    %73 = vmatprep.subr.mxu0 0.0
    %74 = vmatpush1.xpose.msra.mxu0 0.0
    %75 = vmatprep.subr.mxu0 0.0
    %76 = vmatpush1.xpose.msra.mxu0 0.0
    %77 = vmatprep.subr.mxu0 0.0
    %78 = vmatpush1.xpose.msra.mxu0 0.0
    %79 = vmatprep.subr.mxu0 0.0
    %80 = vmatpush1.xpose.msra.mxu0 0.0
    %81 = vmatprep.subr.mxu0 0.0
    %82 = vmatpush1.xpose.msra.mxu0 0.0
    %83 = vmatprep.subr.mxu0 0.0
    %84 = vmatpush1.xpose.msra.mxu0 0.0
    %85 = vmatprep.subr.mxu0 0.0
    %86 = vmatpush1.xpose.msra.mxu0 0.0
    %87 = vmatprep.subr.mxu0 0.0
    %88 = vmatpush1.xpose.msra.mxu0 0.0
    %89 = vmatprep.subr.mxu0 0.0
    %90 = vmatpush1.xpose.msra.mxu0 0.0
    %91 = vmatprep.subr.mxu0 0.0
    %92 = vmatpush1.xpose.msra.mxu0 0.0
    %93 = vmatprep.subr.mxu0 0.0
    %94 = vmatpush1.xpose.msra.mxu0 0.0
    %95 = vmatprep.subr.mxu0 0.0
    %96 = vmatpush1.xpose.msra.mxu0 0.0
    %97 = vmatprep.subr.mxu0 0.0
    %98 = vmatpush1.xpose.msra.mxu0 0.0
    %99 = vmatprep.subr.mxu0 0.0
    %100 = vmatpush1.xpose.msra.mxu0 0.0
    %101 = vmatprep.subr.mxu0 0.0
    %102 = vmatpush1.xpose.msra.mxu0 0.0
    %103 = vmatprep.subr.mxu0 0.0
    %104 = vmatpush1.xpose.msra.mxu0 0.0
    %105 = vmatprep.subr.mxu0 0.0
    %106 = vmatpush1.xpose.msra.mxu0 0.0
    %107 = vmatprep.subr.mxu0 0.0
    %108 = vmatpush1.xpose.msra.mxu0 0.0
    %109 = vmatprep.subr.mxu0 0.0
    %110 = vmatpush1.xpose.msra.mxu0 0.0
    %111 = vmatprep.subr.mxu0 0.0
    %112 = vmatpush1.xpose.msra.mxu0 0.0
    %113 = vmatprep.mubr.f32.mxu0 0.0
    %114 = vmatmul.mubr.f32.gmra.mrb[0].mxu0 %v35
    %v115 = vpop.f32.mrb[0].mxu0
    %v116 = vadd.f32 %v31, %v115
    %v117 = vpop.f32.mrb[0].mxu0
    %118 = vdwg.mxu0
    %v119 = vmax.f32 %v116, 0.0
    %v120 = vld [vmem:[%s3] sm:$0xff]
    %v121 = vld [vmem:[%s3 + $0x8] sm:$0xff]
    %v122 = vld [vmem:[%s3 + $0x10] sm:$0xff]
    %v123 = vld [vmem:[%s3 + $0x18] sm:$0xff]
    %v124 = vld [vmem:[%s3 + $0x20] sm:$0xff]
    %v125 = vld [vmem:[%s3 + $0x28] sm:$0xff]
    %v126 = vld [vmem:[%s3 + $0x30] sm:$0xff]
    %v127 = vld [vmem:[%s3 + $0x38] sm:$0xff]
    %v128 = vld [vmem:[%s3 + $0x40] sm:$0xff]
    %v129 = vld [vmem:[%s3 + $0x48] sm:$0xff]
    %v130 = vld [vmem:[%s3 + $0x50] sm:$0xff]
    %v131 = vld [vmem:[%s3 + $0x58] sm:$0xff]
    %v132 = vld [vmem:[%s3 + $0x60] sm:$0xff]
    %v133 = vld [vmem:[%s3 + $0x68] sm:$0xff]
    %v134 = vld [vmem:[%s3 + $0x70] sm:$0xff]
    %v135 = vld [vmem:[%s3 + $0x78] sm:$0xff]
    %v136 = vld [vmem:[%s4] sm:$0x1]
    %v138 = vlaneseq
    %v139 = vshrl.u32 %v138, 7
    %v140 = vsub.s32 0, %v139
    %v141 = vrot.slane %v136, %v140
    %vm143 = vcmask 261120
    %v145 = vsel %vm143, %v119, 0
    %v148 = vsel %vm143, %v120, 0
    %v151 = vsel %vm143, %v121, 0
    %v154 = vsel %vm143, %v122, 0
    %v157 = vsel %vm143, %v123, 0
    %v160 = vsel %vm143, %v124, 0
    %v163 = vsel %vm143, %v125, 0
    %v166 = vsel %vm143, %v126, 0
    %v169 = vsel %vm143, %v127, 0
    %v172 = vsel %vm143, %v128, 0
    %v175 = vsel %vm143, %v129, 0
    %v178 = vsel %vm143, %v130, 0
    %v181 = vsel %vm143, %v131, 0
    %v184 = vsel %vm143, %v132, 0
    %v187 = vsel %vm143, %v133, 0
    %v190 = vsel %vm143, %v134, 0
    %v193 = vsel %vm143, %v135, 0
    %195 = vmatprep.subr.mxu0 0.0
    %196 = vmatpush1.xpose.msra.mxu0 %v148
    %197 = vmatprep.subr.mxu0 0.0
    %198 = vmatpush1.xpose.msra.mxu0 %v151
    %199 = vmatprep.subr.mxu0 0.0
    %200 = vmatpush1.xpose.msra.mxu0 %v154
    %201 = vmatprep.subr.mxu0 0.0
    %202 = vmatpush1.xpose.msra.mxu0 %v157
    %203 = vmatprep.subr.mxu0 0.0
    %204 = vmatpush1.xpose.msra.mxu0 %v160
    %205 = vmatprep.subr.mxu0 0.0
    %206 = vmatpush1.xpose.msra.mxu0 %v163
    %207 = vmatprep.subr.mxu0 0.0
    %208 = vmatpush1.xpose.msra.mxu0 %v166
    %209 = vmatprep.subr.mxu0 0.0
    %210 = vmatpush1.xpose.msra.mxu0 %v169
    %211 = vmatprep.subr.mxu0 0.0
    %212 = vmatpush1.xpose.msra.mxu0 %v172
    %213 = vmatprep.subr.mxu0 0.0
    %214 = vmatpush1.xpose.msra.mxu0 %v175
    %215 = vmatprep.subr.mxu0 0.0
    %216 = vmatpush1.xpose.msra.mxu0 %v178
    %217 = vmatprep.subr.mxu0 0.0
    %218 = vmatpush1.xpose.msra.mxu0 %v181
    %219 = vmatprep.subr.mxu0 0.0
    %220 = vmatpush1.xpose.msra.mxu0 %v184
    %221 = vmatprep.subr.mxu0 0.0
    %222 = vmatpush1.xpose.msra.mxu0 %v187
    %223 = vmatprep.subr.mxu0 0.0
    %224 = vmatpush1.xpose.msra.mxu0 %v190
    %225 = vmatprep.subr.mxu0 0.0
    %226 = vmatpush1.xpose.msra.mxu0 %v193
    %227 = vmatprep.subr.mxu0 0.0
    %228 = vmatpush1.xpose.msra.mxu0 0.0
    %229 = vmatprep.subr.mxu0 0.0
    %230 = vmatpush1.xpose.msra.mxu0 0.0
    %231 = vmatprep.subr.mxu0 0.0
    %232 = vmatpush1.xpose.msra.mxu0 0.0
    %233 = vmatprep.subr.mxu0 0.0
    %234 = vmatpush1.xpose.msra.mxu0 0.0
    %235 = vmatprep.subr.mxu0 0.0
    %236 = vmatpush1.xpose.msra.mxu0 0.0
    %237 = vmatprep.subr.mxu0 0.0
    %238 = vmatpush1.xpose.msra.mxu0 0.0
    %239 = vmatprep.subr.mxu0 0.0
    %240 = vmatpush1.xpose.msra.mxu0 0.0
    %241 = vmatprep.subr.mxu0 0.0
    %242 = vmatpush1.xpose.msra.mxu0 0.0
    %243 = vmatprep.subr.mxu0 0.0
    %244 = vmatpush1.xpose.msra.mxu0 0.0
    %245 = vmatprep.subr.mxu0 0.0
    %246 = vmatpush1.xpose.msra.mxu0 0.0
    %247 = vmatprep.subr.mxu0 0.0
    %248 = vmatpush1.xpose.msra.mxu0 0.0
    %249 = vmatprep.subr.mxu0 0.0
    %250 = vmatpush1.xpose.msra.mxu0 0.0
    %251 = vmatprep.subr.mxu0 0.0
    %252 = vmatpush1.xpose.msra.mxu0 0.0
    %253 = vmatprep.subr.mxu0 0.0
    %254 = vmatpush1.xpose.msra.mxu0 0.0
    %255 = vmatprep.subr.mxu0 0.0
    %256 = vmatpush1.xpose.msra.mxu0 0.0
    %257 = vmatprep.subr.mxu0 0.0
    %258 = vmatpush1.xpose.msra.mxu0 0.0
    %259 = vmatprep.mubr.f32.mxu0 0.0
    %260 = vmatmul.mubr.f32.gmra.mrb[0].mxu0 %v145
    %v261 = vpop.f32.mrb[0].mxu0
    %v262 = vadd.f32 %v141, %v261
    %v263 = vpop.f32.mrb[0].mxu0
    %264 = vdwg.mxu0
    %265 = vmax.xlane.f32.xlu0 %v262
    %v266 = vpop.xlane.xlu0 %265
    %v267 = vsub.f32 %v262, %v266
    %v268 = vmul.f32 %v267, 1.442695
    %v269 = vpow.pop %v268
    %270 = vadd.xlane.f32.xlu0 %v269
    %v271 = vpop.xlane.xlu0 %270
    %v272 = vrcp.pop %v271
    %v273 = vmul.f32 %v269, %v272
    %274 = vst [vmem:[#allocation2] sm:$0xff] %v273
    // Predicated region
    $region22: #{tpu_custom_call.1} parent=1 // pred_check
      _
    $region23: #{tpu_custom_call.1} parent=1 // pred_check_branch
      %276 = sbr.rel (0) target = $region25
    $region24: #{tpu_custom_call.1} parent=1 // pred_region
      %s278 = ssub.s32 128, 128
      %279 = vsyncadd [#allocation3], %s278
      %s281 = sshll.u32 [#allocation2], 4
      %s282 = int_to_ptr.vmem [resolvable:$true] %s281
      %284 = dma.vmem_to_hbm [thread:$0]  %s282, 128, %s5, [#allocation3]
    $region25: #{tpu_custom_call.1} parent=1 // pred_fallthru
      _
    // Predicated region
    $region26: #{tpu_custom_call.1} parent=1 // pred_check
      _
    $region27: #{tpu_custom_call.1} parent=1 // pred_check_branch
      %286 = sbr.rel (0) target = $region29
    $region28: #{tpu_custom_call.1} parent=1 // pred_region
      %287 = dma.done [#allocation3], 128
    $region29: #{tpu_custom_call.1} parent=1 // pred_fallthru
      _
    %288 = vsyncpa [#allocation3], 1

</llo_original>
